<compile_context>
chip_gen: v6e
topology: v6e:2x2x1
jax: 0.10.0
libtpu: 0.0.40
codegen_flags: <defaults>
</compile_context>

<pallas_src>
import jax
import jax.numpy as jnp
import numpy as np
from jax.experimental import pallas as pl
from jax.experimental.pallas import tpu as pltpu

EPS = 1e-6  # LayerNormalization eps


def _pick_tile_m(M: int, target: int = 256) -> int:
    """Largest multiple of 8 <= target that divides M (fallback: full M)."""
    t = min(target, M)
    t -= t % 8
    while t >= 8 and M % t != 0:
        t -= 8
    if t < 8 or M % t != 0:
        t = M  # full-extent block is always legal
    return t


# --------------------------- fused residual block -----------------------------
def fused_residual(x2, alpha, bias, sublayer_fn, params, rand2, p,
                   *, tile_target=256):
    """out = x2 + dropout_p(sublayer_fn(layernorm(x2), *params)), fused."""
    M, D = x2.shape
    tile_m = _pick_tile_m(M, tile_target)
    n_params = len(params)
    use_dropout = p > 0.0
    p = float(p)

    def kernel(*refs):
        alpha_ref, bias_ref, x_ref = refs[0], refs[1], refs[2]
        idx = 3
        if use_dropout:
            rand_ref = refs[idx]
            idx += 1
        param_refs = refs[idx:idx + n_params]
        o_ref = refs[idx + n_params]

        x = x_ref[...]
        xf = x.astype(jnp.float32)

        # ---- LayerNormalization (scalar alpha / bias, unbiased=False var) ----
        mean = jnp.mean(xf, axis=-1, keepdims=True)
        var = jnp.mean((xf - mean) ** 2, axis=-1, keepdims=True)
        inv = jax.lax.rsqrt(var + EPS)
        normed = (alpha_ref[0] * (xf - mean) * inv + bias_ref[0]).astype(x.dtype)

        # ---- sublayer (dense D -> D on the MXU for the demo) ----
        y = sublayer_fn(normed, *[r[...] for r in param_refs]).astype(jnp.float32)

        # ---- dropout ----
        if use_dropout:
            keep = rand_ref[...] >= jnp.float32(p)          # P(drop) == p
            scale = jnp.float32(1.0 / (1.0 - p))
            y = jnp.where(keep, y * scale, jnp.zeros_like(y))

        # ---- residual add (explicit cast back to the output dtype) ----
        o_ref[...] = (xf + y).astype(o_ref.dtype)

    in_specs = [
        pl.BlockSpec(memory_space=pltpu.MemorySpace.SMEM),   # alpha (1,)
        pl.BlockSpec(memory_space=pltpu.MemorySpace.SMEM),   # bias  (1,)
        pl.BlockSpec((tile_m, D), lambda i: (i, 0)),          # x tile
    ]
    operands = [alpha, bias, x2]

    if use_dropout:
        in_specs.append(pl.BlockSpec((tile_m, D), lambda i: (i, 0)))  # rand tile
        operands.append(rand2)

    for prm in params:
        # Constant block index -> weight/bias stay resident in VMEM across grid.
        in_specs.append(
            pl.BlockSpec(prm.shape, lambda i, nd=prm.ndim: (0,) * nd))
        operands.append(prm)

    return pl.pallas_call(
        kernel,
        out_shape=jax.ShapeDtypeStruct((M, D), x2.dtype),
        grid=(M // tile_m,),
        in_specs=in_specs,
        out_specs=pl.BlockSpec((tile_m, D), lambda i: (i, 0)),
        compiler_params=pltpu.CompilerParams(
            dimension_semantics=("parallel",),   # megacore-shardable on v7x
        ),
    )(*operands)


# ------------------------------ module wrapper --------------------------------
class ResidualConnection:
    """x + dropout(sublayer(LayerNormalization(x))).

    `sublayer_fn(h, *params)` must be a JAX-traceable, row-wise function of a
    [tile_m, D] block; its `params` are passed as VMEM-resident operands so the
    whole chain runs inside one fused Pallas kernel.
    """

    def __init__(self, dropout: float):
        self.dropout = float(dropout)
        # LayerNormalization parameters: scalar alpha=1, bias=0 (as in PyTorch).
        self.alpha = jnp.ones((1,), jnp.float32)
        self.bias = jnp.zeros((1,), jnp.float32)

    def __call__(self, x, sublayer_fn, sublayer_params=(), *,
                 key=None, training=True):
        B, S, D = x.shape
        M = B * S
        x2 = x.reshape(M, D)

        p = self.dropout if training else 0.0
        rand2 = None
        if p > 0.0:
            if key is None:
                key = jax.random.PRNGKey(0)
            rand2 = jax.random.uniform(key, (M, D), jnp.float32)

        out2 = fused_residual(x2, self.alpha, self.bias,
                              sublayer_fn, tuple(sublayer_params), rand2, p)
        return out2.reshape(B, S, D)


# ---------------------------------- demo --------------------------------------
def dense_sublayer(h, w, b):
    """Example sublayer: dense D -> D (runs on the MXU inside the fused kernel)."""
    return (jnp.dot(h, w, preferred_element_type=jnp.float32) + b).astype(h.dtype)


if __name__ == "__main__":
    B, S, D = 2, 16, 128
    key = jax.random.PRNGKey(0)
    kx, kw, kb, kd = jax.random.split(key, 4)

    x = jax.random.normal(kx, (B, S, D), jnp.float32)
    w = jax.random.normal(kw, (D, D), jnp.float32) * (1.0 / jnp.sqrt(D))
    b = jax.random.normal(kb, (1, D), jnp.float32) * 0.01

    block = ResidualConnection(dropout=0.1)
    out = block(x, dense_sublayer, (w, b), key=kd, training=True)
    out = jax.block_until_ready(out)

    # ---- pure-JAX reference (same precomputed dropout randomness) ----
    x2 = x.reshape(B * S, D)
    mean = x2.mean(axis=-1, keepdims=True)
    var = ((x2 - mean) ** 2).mean(axis=-1, keepdims=True)
    normed = (x2 - mean) / jnp.sqrt(var + EPS)          # alpha=1, bias=0
    y = normed @ w + b
    rand = jax.random.uniform(kd, (B * S, D), jnp.float32)
    p = 0.1
    y = jnp.where(rand >= p, y / (1.0 - p), 0.0)
    ref = (x2 + y).reshape(B, S, D)

    assert out.shape == (B, S, D) and out.dtype == jnp.float32
    np.testing.assert_allclose(np.asarray(out), np.asarray(ref),
                               rtol=1e-2, atol=1e-2)
    print("KERNEL_OK")
</pallas_src>

<mosaic_0001>
module attributes {stable_mosaic.version = 11 : i64} {
  func.func @kernel(%arg0: i32, %arg1: memref<1xf32, #tpu.memory_space<smem>>, %arg2: memref<1xf32, #tpu.memory_space<smem>>, %arg3: memref<32x128xf32, #tpu.memory_space<vmem>>, %arg4: memref<32x128xf32, #tpu.memory_space<vmem>>, %arg5: memref<128x128xf32, #tpu.memory_space<vmem>>, %arg6: memref<1x128xf32, #tpu.memory_space<vmem>>, %arg7: memref<32x128xf32, #tpu.memory_space<vmem>>) attributes {dimension_semantics = [#tpu.dimension_semantics<parallel>], iteration_bounds = array<i64: 1>, scalar_prefetch = 0 : i64, scratch_operands = 0 : i64, tpu.core_type = #tpu.core_type<tc>, window_params = [{transform_indices = @transform_0, window_bounds = array<i64: 1>}, {transform_indices = @transform_1, window_bounds = array<i64: 1>}, {transform_indices = @transform_2, window_bounds = array<i64: 32, 128>}, {transform_indices = @transform_3, window_bounds = array<i64: 32, 128>}, {pipeline_mode = #tpu.pipeline_mode<synchronous>, transform_indices = @transform_4, window_bounds = array<i64: 128, 128>}, {pipeline_mode = #tpu.pipeline_mode<synchronous>, transform_indices = @transform_5, window_bounds = array<i64: 1, 128>}, {transform_indices = @transform_6, window_bounds = array<i64: 32, 128>}]} {
    %c0 = arith.constant 0 : index
    %c0_0 = arith.constant 0 : index
    %0 = vector.load %arg3[%c0, %c0_0] : memref<32x128xf32, #tpu.memory_space<vmem>>, vector<32x128xf32>
    %cst = arith.constant dense<0.000000e+00> : vector<32xf32>
    %1 = vector.multi_reduction <add>, %0, %cst [1] : vector<32x128xf32> to vector<32xf32>
    %2 = vector.shape_cast %1 : vector<32xf32> to vector<32x1xf32>
    %cst_1 = arith.constant 1.280000e+02 : f32
    %3 = vector.broadcast %cst_1 : f32 to vector<32x1xf32>
    %4 = arith.divf %2, %3 : vector<32x1xf32>
    %5 = vector.broadcast %4 : vector<32x1xf32> to vector<32x128xf32>
    %6 = arith.subf %0, %5 : vector<32x128xf32>
    %7 = arith.mulf %6, %6 : vector<32x128xf32>
    %cst_2 = arith.constant dense<0.000000e+00> : vector<32xf32>
    %8 = vector.multi_reduction <add>, %7, %cst_2 [1] : vector<32x128xf32> to vector<32xf32>
    %9 = vector.shape_cast %8 : vector<32xf32> to vector<32x1xf32>
    %cst_3 = arith.constant 1.280000e+02 : f32
    %10 = vector.broadcast %cst_3 : f32 to vector<32x1xf32>
    %11 = arith.divf %9, %10 : vector<32x1xf32>
    %cst_4 = arith.constant 9.99999997E-7 : f32
    %12 = vector.broadcast %cst_4 : f32 to vector<32x1xf32>
    %13 = arith.addf %11, %12 : vector<32x1xf32>
    %14 = math.rsqrt %13 : vector<32x1xf32>
    %c0_5 = arith.constant 0 : index
    %15 = memref.load %arg1[%c0_5] : memref<1xf32, #tpu.memory_space<smem>>
    %16 = vector.broadcast %4 : vector<32x1xf32> to vector<32x128xf32>
    %17 = arith.subf %0, %16 : vector<32x128xf32>
    %18 = vector.broadcast %15 : f32 to vector<32x128xf32>
    %19 = arith.mulf %18, %17 : vector<32x128xf32>
    %20 = vector.broadcast %14 : vector<32x1xf32> to vector<32x128xf32>
    %21 = arith.mulf %19, %20 : vector<32x128xf32>
    %c0_6 = arith.constant 0 : index
    %22 = memref.load %arg2[%c0_6] : memref<1xf32, #tpu.memory_space<smem>>
    %23 = vector.broadcast %22 : f32 to vector<32x128xf32>
    %24 = arith.addf %21, %23 : vector<32x128xf32>
    %c0_7 = arith.constant 0 : index
    %c0_8 = arith.constant 0 : index
    %25 = vector.load %arg5[%c0_7, %c0_8] : memref<128x128xf32, #tpu.memory_space<vmem>>, vector<128x128xf32>
    %c0_9 = arith.constant 0 : index
    %c0_10 = arith.constant 0 : index
    %26 = vector.load %arg6[%c0_9, %c0_10] : memref<1x128xf32, #tpu.memory_space<vmem>>, vector<1x128xf32>
    %cst_11 = arith.constant dense<0.000000e+00> : vector<32x128xf32>
    %27 = tpu.matmul %24, %25, %cst_11 {dimension_numbers = #tpu.dot_dimension_numbers<[1], [0], [0], [1], [0, 0, 1, 1], [], []>} : vector<32x128xf32>, vector<128x128xf32>, vector<32x128xf32> -> vector<32x128xf32>
    %28 = vector.broadcast %26 : vector<1x128xf32> to vector<32x128xf32>
    %29 = arith.addf %27, %28 : vector<32x128xf32>
    %c0_12 = arith.constant 0 : index
    %c0_13 = arith.constant 0 : index
    %30 = vector.load %arg4[%c0_12, %c0_13] : memref<32x128xf32, #tpu.memory_space<vmem>>, vector<32x128xf32>
    %cst_14 = arith.constant 1.000000e-01 : f32
    %31 = vector.broadcast %cst_14 : f32 to vector<32x128xf32>
    %32 = arith.cmpf oge, %30, %31 : vector<32x128xf32>
    %cst_15 = arith.constant 1.11111116 : f32
    %33 = vector.broadcast %cst_15 : f32 to vector<32x128xf32>
    %34 = arith.mulf %29, %33 : vector<32x128xf32>
    %cst_16 = arith.constant 0.000000e+00 : f32
    %35 = vector.broadcast %cst_16 : f32 to vector<32x128xf32>
    %36 = arith.select %32, %34, %35 : vector<32x128xi1>, vector<32x128xf32>
    %37 = arith.addf %0, %36 : vector<32x128xf32>
    %c0_17 = arith.constant 0 : index
    %c0_18 = arith.constant 0 : index
    %38 = vector.load %arg7[%c0_17, %c0_18] : memref<32x128xf32, #tpu.memory_space<vmem>>, vector<32x128xf32>
    tpu.vector_store %arg7[%c0_17, %c0_18], %37 {strides = array<i32>} : memref<32x128xf32, #tpu.memory_space<vmem>>, vector<32x128xf32>,
    return
  }
  func.func @transform_0(%arg0: i32) -> i32 {
    %c0_i32 = arith.constant 0 : i32
    %c0_i32_0 = arith.constant 0 : i32
    return %c0_i32 : i32
  }
  func.func @transform_1(%arg0: i32) -> i32 {
    %c0_i32 = arith.constant 0 : i32
    %c0_i32_0 = arith.constant 0 : i32
    return %c0_i32 : i32
  }
  func.func @transform_2(%arg0: i32) -> (i32, i32) {
    %c0_i32 = arith.constant 0 : i32
    %c0_i32_0 = arith.constant 0 : i32
    return %arg0, %c0_i32 : i32, i32
  }
  func.func @transform_3(%arg0: i32) -> (i32, i32) {
    %c0_i32 = arith.constant 0 : i32
    %c0_i32_0 = arith.constant 0 : i32
    return %arg0, %c0_i32 : i32, i32
  }
  func.func @transform_4(%arg0: i32) -> (i32, i32) {
    %c0_i32 = arith.constant 0 : i32
    %c0_i32_0 = arith.constant 0 : i32
    %c0_i32_1 = arith.constant 0 : i32
    return %c0_i32, %c0_i32_0 : i32, i32
  }
  func.func @transform_5(%arg0: i32) -> (i32, i32) {
    %c0_i32 = arith.constant 0 : i32
    %c0_i32_0 = arith.constant 0 : i32
    %c0_i32_1 = arith.constant 0 : i32
    return %c0_i32, %c0_i32_0 : i32, i32
  }
  func.func @transform_6(%arg0: i32) -> (i32, i32) {
    %c0_i32 = arith.constant 0 : i32
    %c0_i32_0 = arith.constant 0 : i32
    return %arg0, %c0_i32 : i32, i32
  }
}

</mosaic_0001>

<llo_original>
// kernel: tpu_custom_call.1
$region0: #{tpu_custom_call.1}
  #allocation0 [shape = 'u32[]', space=smem, size = 0x4, offset = 0x4, fixed_abs, tag = 'smem constant byte address 0x4 - core index']
  #allocation1 [shape = 'u32[144,128]{1,0:T(1,128)}', space=vmem, size = 0x12000, scoped, tag = 'internal scratch']
  #allocation2 [shape = 'f32[1]{0:T(128)S(6)}', space=smem, size = 0x200, scoped, tag = 'scoped memory for tpu_custom_call.1']
  #allocation3 [shape = 'f32[1]{0:T(128)S(6)}', space=smem, size = 0x200, scoped, tag = 'scoped memory for tpu_custom_call.1']
  %s0 = inlined_call_operand.<no memory space> [shape: f32[1], index: 0, kind: input, shape index: {}]
  %s1 = inlined_call_operand.<no memory space> [shape: f32[1], index: 1, kind: input, shape index: {}]
  %s2 = inlined_call_operand.hbm [shape: f32[32,128], index: 2, kind: input, shape index: {}]
  %s3 = inlined_call_operand.hbm [shape: f32[32,128], index: 3, kind: input, shape index: {}]
  %s4 = inlined_call_operand.hbm [shape: f32[128,128], index: 4, kind: input, shape index: {}]
  %s5 = inlined_call_operand.vmem [shape: f32[1,128], index: 5, kind: input, shape index: {}]
  %s6 = inlined_call_operand.hbm [shape: f32[32,128], index: 6, kind: output, shape index: {}]
  %s7 = sld [smem:[#allocation0]]
  $region46: #{tpu_custom_call.1} parent=0
    _
  %s9 = ssub.s32 1, %s7
  %s10 = scalar_select 0, %s9, %s7
  %11 = sst [smem:[#allocation2]] %s0
  %12 = sst [smem:[#allocation3]] %s1
  $region1: #{tpu_custom_call.1} parent=0
    #allocation4 [shape = 'u8[16384]{0}', space=vmem, size = 0x4000, scoped, tag = 'input window, operand 2, single buffered']
    #allocation5 [shape = 's32[1]{0}', space=sflag, size = 0x4, scoped, tag = 'scoped memory for tpu_custom_call.1']
    #allocation6 [shape = 's32[1]{0}', space=sflag, size = 0x4, scoped, tag = 'scoped memory for tpu_custom_call.1']
    #allocation7 [shape = 'u8[16384]{0}', space=vmem, size = 0x4000, scoped, tag = 'input window, operand 3, single buffered']
    #allocation8 [shape = 's32[1]{0}', space=sflag, size = 0x4, scoped, tag = 'scoped memory for tpu_custom_call.1']
    #allocation9 [shape = 'u8[65536]{0}', space=vmem, size = 0x10000, scoped, tag = 'input window, operand 4, single buffered']
    #allocation10 [shape = 'u8[16384]{0}', space=vmem, size = 0x4000, scoped, tag = 'output window, operand 0, single buffered']
    %13 = vsyncpa [#allocation5], 0
    %14 = vsyncpa [#allocation8], 0
    %15 = vsyncpa [#allocation6], 0
    // Predicated region
    $region2: #{tpu_custom_call.1} parent=1 // pred_check
      _
    $region3: #{tpu_custom_call.1} parent=1 // pred_check_branch
      %17 = sbr.rel (0) target = $region5
    $region4: #{tpu_custom_call.1} parent=1 // pred_region
      _
    $region5: #{tpu_custom_call.1} parent=1 // pred_fallthru
      _
    // Predicated region
    $region6: #{tpu_custom_call.1} parent=1 // pred_check
      _
    $region7: #{tpu_custom_call.1} parent=1 // pred_check_branch
      %19 = sbr.rel (0) target = $region9
    $region8: #{tpu_custom_call.1} parent=1 // pred_region
      _
    $region9: #{tpu_custom_call.1} parent=1 // pred_fallthru
      _
    // Predicated region
    $region10: #{tpu_custom_call.1} parent=1 // pred_check
      _
    $region11: #{tpu_custom_call.1} parent=1 // pred_check_branch
      %21 = sbr.rel (0) target = $region13
    $region12: #{tpu_custom_call.1} parent=1 // pred_region
      %s23 = ssub.s32 512, 512
      %24 = vsyncadd [#allocation5], %s23
      %s25 = sshll.u32 [#allocation4], 4
      %s26 = int_to_ptr.vmem [resolvable:$true] %s25
      %31 = dma.hbm_to_vmem [thread:$0]  %s2, 512, %s26, [#allocation5], 128, 128, 8
    $region13: #{tpu_custom_call.1} parent=1 // pred_fallthru
      _
    // Predicated region
    $region14: #{tpu_custom_call.1} parent=1 // pred_check
      _
    $region15: #{tpu_custom_call.1} parent=1 // pred_check_branch
      %33 = sbr.rel (0) target = $region17
    $region16: #{tpu_custom_call.1} parent=1 // pred_region
      %s35 = ssub.s32 512, 512
      %36 = vsyncadd [#allocation8], %s35
      %s37 = sshll.u32 [#allocation7], 4
      %s38 = int_to_ptr.vmem [resolvable:$true] %s37
      %43 = dma.hbm_to_vmem [thread:$0]  %s3, 512, %s38, [#allocation8], 128, 128, 8
    $region17: #{tpu_custom_call.1} parent=1 // pred_fallthru
      _
    // Predicated region
    $region18: #{tpu_custom_call.1} parent=1 // pred_check
      _
    $region19: #{tpu_custom_call.1} parent=1 // pred_check_branch
      %45 = sbr.rel (0) target = $region21
    $region20: #{tpu_custom_call.1} parent=1 // pred_region
      %s47 = ssub.s32 2048, 2048
      %48 = vsyncadd [#allocation8], %s47
      %s49 = sshll.u32 [#allocation9], 4
      %s50 = int_to_ptr.vmem [resolvable:$true] %s49
      %55 = dma.hbm_to_vmem [thread:$0]  %s4, 2048, %s50, [#allocation8], 128, 128, 8
    $region21: #{tpu_custom_call.1} parent=1 // pred_fallthru
      _
    // Predicated region
    $region22: #{tpu_custom_call.1} parent=1 // pred_check
      _
    $region23: #{tpu_custom_call.1} parent=1 // pred_check_branch
      %57 = sbr.rel (0) target = $region25
    $region24: #{tpu_custom_call.1} parent=1 // pred_region
      _
    $region25: #{tpu_custom_call.1} parent=1 // pred_fallthru
      _
    // Predicated region
    $region26: #{tpu_custom_call.1} parent=1 // pred_check
      _
    $region27: #{tpu_custom_call.1} parent=1 // pred_check_branch
      %59 = sbr.rel (0) target = $region29
    $region28: #{tpu_custom_call.1} parent=1 // pred_region
      %60 = dma.done [#allocation5], 512
    $region29: #{tpu_custom_call.1} parent=1 // pred_fallthru
      _
    // Predicated region
    $region30: #{tpu_custom_call.1} parent=1 // pred_check
      _
    $region31: #{tpu_custom_call.1} parent=1 // pred_check_branch
      %62 = sbr.rel (0) target = $region33
    $region32: #{tpu_custom_call.1} parent=1 // pred_region
      %63 = dma.done [#allocation8], 512
    $region33: #{tpu_custom_call.1} parent=1 // pred_fallthru
      _
    // Predicated region
    $region34: #{tpu_custom_call.1} parent=1 // pred_check
      _
    $region35: #{tpu_custom_call.1} parent=1 // pred_check_branch
      %65 = sbr.rel (0) target = $region37
    $region36: #{tpu_custom_call.1} parent=1 // pred_region
      %66 = dma.done [#allocation8], 2048
    $region37: #{tpu_custom_call.1} parent=1 // pred_fallthru
      _
    %v67 = vld [vmem:[#allocation4] sm:$0xff]
    %v68 = vld [vmem:[#allocation4 + $0x8] sm:$0xff]
    %v69 = vld [vmem:[#allocation4 + $0x10] sm:$0xff]
    %v70 = vld [vmem:[#allocation4 + $0x18] sm:$0xff]
    %71 = vadd.xlane.f32.xlu0 %v67
    %v72 = vpop.xlane.xlu0 %71
    %73 = vadd.xlane.f32.xlu0 %v68
    %v74 = vpop.xlane.xlu0 %73
    %75 = vadd.xlane.f32.xlu0 %v69
    %v76 = vpop.xlane.xlu0 %75
    %77 = vadd.xlane.f32.xlu0 %v70
    %v78 = vpop.xlane.xlu0 %77
    %v79 = vrcp.pop 128.0
    %v80 = vmul.f32 %v72, %v79
    %v81 = vmul.f32 %v74, %v79
    %v82 = vmul.f32 %v76, %v79
    %v83 = vmul.f32 %v78, %v79
    %v84 = vsub.f32 %v67, %v80
    %v85 = vsub.f32 %v68, %v81
    %v86 = vsub.f32 %v69, %v82
    %v87 = vsub.f32 %v70, %v83
    %v88 = vmul.f32 %v84, %v84
    %v89 = vmul.f32 %v85, %v85
    %v90 = vmul.f32 %v86, %v86
    %v91 = vmul.f32 %v87, %v87
    %92 = vadd.xlane.f32.xlu0 %v88
    %v93 = vpop.xlane.xlu0 %92
    %94 = vadd.xlane.f32.xlu0 %v89
    %v95 = vpop.xlane.xlu0 %94
    %96 = vadd.xlane.f32.xlu0 %v90
    %v97 = vpop.xlane.xlu0 %96
    %98 = vadd.xlane.f32.xlu0 %v91
    %v99 = vpop.xlane.xlu0 %98
    %v100 = vmul.f32 %v93, %v79
    %v101 = vmul.f32 %v95, %v79
    %v102 = vmul.f32 %v97, %v79
    %v103 = vmul.f32 %v99, %v79
    %v104 = vadd.f32 %v100, 1e-06
    %v105 = vadd.f32 %v101, 1e-06
    %v106 = vadd.f32 %v102, 1e-06
    %v107 = vadd.f32 %v103, 1e-06
    %v108 = vrsqrt.pop %v104
    %v109 = vrsqrt.pop %v105
    %v110 = vrsqrt.pop %v106
    %v111 = vrsqrt.pop %v107
    %s112 = sld [smem:[#allocation2]]
    %v113 = vstv %s112
    %v114 = vmul.f32 %v113, %v84
    %v115 = vmul.f32 %v113, %v85
    %v116 = vmul.f32 %v113, %v86
    %v117 = vmul.f32 %v113, %v87
    %v118 = vmul.f32 %v114, %v108
    %v119 = vmul.f32 %v115, %v109
    %v120 = vmul.f32 %v116, %v110
    %v121 = vmul.f32 %v117, %v111
    %s122 = sld [smem:[#allocation3]]
    %v123 = vstv %s122
    %v124 = vadd.f32 %v118, %v123
    %v125 = vadd.f32 %v119, %v123
    %v126 = vadd.f32 %v120, %v123
    %v127 = vadd.f32 %v121, %v123
    %v128 = vld [vmem:[#allocation9] sm:$0xff]
    %v129 = vld [vmem:[#allocation9 + $0x8] sm:$0xff]
    %v130 = vld [vmem:[#allocation9 + $0x10] sm:$0xff]
    %v131 = vld [vmem:[#allocation9 + $0x18] sm:$0xff]
    %v132 = vld [vmem:[#allocation9 + $0x20] sm:$0xff]
    %v133 = vld [vmem:[#allocation9 + $0x28] sm:$0xff]
    %v134 = vld [vmem:[#allocation9 + $0x30] sm:$0xff]
    %v135 = vld [vmem:[#allocation9 + $0x38] sm:$0xff]
    %v136 = vld [vmem:[#allocation9 + $0x40] sm:$0xff]
    %v137 = vld [vmem:[#allocation9 + $0x48] sm:$0xff]
    %v138 = vld [vmem:[#allocation9 + $0x50] sm:$0xff]
    %v139 = vld [vmem:[#allocation9 + $0x58] sm:$0xff]
    %v140 = vld [vmem:[#allocation9 + $0x60] sm:$0xff]
    %v141 = vld [vmem:[#allocation9 + $0x68] sm:$0xff]
    %v142 = vld [vmem:[#allocation9 + $0x70] sm:$0xff]
    %v143 = vld [vmem:[#allocation9 + $0x78] sm:$0xff]
    %v144 = vld [vmem:[%s5] sm:$0x1]
    %v146 = vlaneseq
    %v147 = vshrl.u32 %v146, 7
    %v148 = vsub.s32 0, %v147
    %v149 = vrot.slane %v144, %v148
    %151 = vmatprep.subr.mxu0 0.0
    %152 = vmatpush1.msra.mxu0 %v143
    %153 = vmatprep.subr.mxu0 0.0
    %154 = vmatpush1.msra.mxu0 %v142
    %155 = vmatprep.subr.mxu0 0.0
    %156 = vmatpush1.msra.mxu0 %v141
    %157 = vmatprep.subr.mxu0 0.0
    %158 = vmatpush1.msra.mxu0 %v140
    %159 = vmatprep.subr.mxu0 0.0
    %160 = vmatpush1.msra.mxu0 %v139
    %161 = vmatprep.subr.mxu0 0.0
    %162 = vmatpush1.msra.mxu0 %v138
    %163 = vmatprep.subr.mxu0 0.0
    %164 = vmatpush1.msra.mxu0 %v137
    %165 = vmatprep.subr.mxu0 0.0
    %166 = vmatpush1.msra.mxu0 %v136
    %167 = vmatprep.subr.mxu0 0.0
    %168 = vmatpush1.msra.mxu0 %v135
    %169 = vmatprep.subr.mxu0 0.0
    %170 = vmatpush1.msra.mxu0 %v134
    %171 = vmatprep.subr.mxu0 0.0
    %172 = vmatpush1.msra.mxu0 %v133
    %173 = vmatprep.subr.mxu0 0.0
    %174 = vmatpush1.msra.mxu0 %v132
    %175 = vmatprep.subr.mxu0 0.0
    %176 = vmatpush1.msra.mxu0 %v131
    %177 = vmatprep.subr.mxu0 0.0
    %178 = vmatpush1.msra.mxu0 %v130
    %179 = vmatprep.subr.mxu0 0.0
    %180 = vmatpush1.msra.mxu0 %v129
    %181 = vmatprep.subr.mxu0 0.0
    %182 = vmatpush1.msra.mxu0 %v128
    %183 = vmatprep.subr.mxu0 0.0
    %184 = vmatpush2.msra.mxu0 0.0
    %185 = vmatprep.subr.mxu0 0.0
    %186 = vmatpush2.msra.mxu0 0.0
    %187 = vmatprep.subr.mxu0 0.0
    %188 = vmatpush2.msra.mxu0 0.0
    %189 = vmatprep.subr.mxu0 0.0
    %190 = vmatpush2.msra.mxu0 0.0
    %191 = vmatprep.subr.mxu0 0.0
    %192 = vmatpush2.msra.mxu0 0.0
    %193 = vmatprep.subr.mxu0 0.0
    %194 = vmatpush2.msra.mxu0 0.0
    %195 = vmatprep.subr.mxu0 0.0
    %196 = vmatpush2.msra.mxu0 0.0
    %197 = vmatprep.subr.mxu0 0.0
    %198 = vmatpush2.msra.mxu0 0.0
    %199 = vmatprep.subr.mxu0 0.0
    %200 = vmatpush2.msra.mxu0 0.0
    %201 = vmatprep.subr.mxu0 0.0
    %202 = vmatpush2.msra.mxu0 0.0
    %203 = vmatprep.subr.mxu0 0.0
    %204 = vmatpush2.msra.mxu0 0.0
    %205 = vmatprep.subr.mxu0 0.0
    %206 = vmatpush2.msra.mxu0 0.0
    %207 = vmatprep.subr.mxu0 0.0
    %208 = vmatpush2.msra.mxu0 0.0
    %209 = vmatprep.subr.mxu0 0.0
    %210 = vmatpush2.msra.mxu0 0.0
    %211 = vmatprep.subr.mxu0 0.0
    %212 = vmatpush2.msra.mxu0 0.0
    %213 = vmatprep.subr.mxu0 0.0
    %214 = vmatpush2.msra.mxu0 0.0
    %215 = vmatprep.mubr.f32.mxu0 0.0
    %216 = vmatmul.mubr.f32.gmra.mxu0 %v124
    %v217 = vpop.f32.mrf.mxu0
    %v218 = vadd.f32 %v149, %v217
    %v219 = vpop.f32.mrf.mxu0
    %220 = vmatprep.mubr.f32.mxu0 0.0
    %221 = vmatmul.mubr.f32.gmra.mxu0 %v125
    %v222 = vpop.f32.mrf.mxu0
    %v223 = vadd.f32 %v149, %v222
    %v224 = vpop.f32.mrf.mxu0
    %225 = vmatprep.mubr.f32.mxu0 0.0
    %226 = vmatmul.mubr.f32.gmra.mxu0 %v126
    %v227 = vpop.f32.mrf.mxu0
    %v228 = vadd.f32 %v149, %v227
    %v229 = vpop.f32.mrf.mxu0
    %230 = vmatprep.mubr.f32.mxu0 0.0
    %231 = vmatmul.mubr.f32.gmra.mxu0 %v127
    %v232 = vpop.f32.mrf.mxu0
    %v233 = vadd.f32 %v149, %v232
    %v234 = vpop.f32.mrf.mxu0
    %235 = vdwg.mxu0
    %v236 = vld [vmem:[#allocation7] sm:$0xff]
    %v237 = vld [vmem:[#allocation7 + $0x8] sm:$0xff]
    %v238 = vld [vmem:[#allocation7 + $0x10] sm:$0xff]
    %v239 = vld [vmem:[#allocation7 + $0x18] sm:$0xff]
    %vm240 = vcmp.ge.f32.partialorder %v236, 0.1
    %vm241 = vcmp.ge.f32.partialorder %v237, 0.1
    %vm242 = vcmp.ge.f32.partialorder %v238, 0.1
    %vm243 = vcmp.ge.f32.partialorder %v239, 0.1
    %v244 = vmul.f32 %v218, 1.1111112
    %v245 = vmul.f32 %v223, 1.1111112
    %v246 = vmul.f32 %v228, 1.1111112
    %v247 = vmul.f32 %v233, 1.1111112
    %v248 = vsel %vm240, %v244, 0.0
    %v249 = vsel %vm241, %v245, 0.0
    %v250 = vsel %vm242, %v246, 0.0
    %v251 = vsel %vm243, %v247, 0.0
    %v252 = vadd.f32 %v67, %v248
    %v253 = vadd.f32 %v68, %v249
    %v254 = vadd.f32 %v69, %v250
    %v255 = vadd.f32 %v70, %v251
    %256 = vst [vmem:[#allocation10] sm:$0xff] %v252
    %257 = vst [vmem:[#allocation10 + $0x8] sm:$0xff] %v253
    %258 = vst [vmem:[#allocation10 + $0x10] sm:$0xff] %v254
    %259 = vst [vmem:[#allocation10 + $0x18] sm:$0xff] %v255
    // Predicated region
    $region38: #{tpu_custom_call.1} parent=1 // pred_check
      _
    $region39: #{tpu_custom_call.1} parent=1 // pred_check_branch
      %261 = sbr.rel (0) target = $region41
    $region40: #{tpu_custom_call.1} parent=1 // pred_region
      %s263 = ssub.s32 512, 512
      %264 = vsyncadd [#allocation6], %s263
      %s265 = sshll.u32 [#allocation10], 4
      %s266 = int_to_ptr.vmem [resolvable:$true] %s265
      %271 = dma.vmem_to_hbm [thread:$0]  %s266, 512, %s6, [#allocation6], 128, 128, 8
    $region41: #{tpu_custom_call.1} parent=1 // pred_fallthru
      _
    // Predicated region
    $region42: #{tpu_custom_call.1} parent=1 // pred_check
      _
    $region43: #{tpu_custom_call.1} parent=1 // pred_check_branch
      %273 = sbr.rel (0) target = $region45
    $region44: #{tpu_custom_call.1} parent=1 // pred_region
      %274 = dma.done [#allocation6], 512
    $region45: #{tpu_custom_call.1} parent=1 // pred_fallthru
      _
    %275 = vsyncpa [#allocation5], 1
    %276 = vsyncpa [#allocation8], 1
    %277 = vsyncpa [#allocation6], 1

</llo_original>
